<compile_context>
chip_gen: v5e
topology: v5e:2x2
jax: 0.10.0
libtpu: 0.0.40
codegen_flags: <defaults>
</compile_context>

<pallas_src>
import functools

import jax
import jax.numpy as jnp
from jax.experimental import pallas as pl
from jax.experimental.pallas import tpu as pltpu


def _stream_kernel(x_ref, w1t_ref, w2s_ref, shift_ref, o_ref, act_ref, *, H, W):
    # x_ref:     (1, Cmax, HW)   input image, channels on sublanes, pixels on lanes
    # w1t_ref:   (1, Cout, Cmax) 1x1 conv weights (transposed, zero-padded input rows)
    # w2s_ref:   (1, Cout, 9)    depthwise 3x3 taps with BN scale folded in (t = ky*3+kx)
    # shift_ref: (1, Cout, 1)    folded BN shift
    # o_ref:     (1, Cout, HW)   final output (written only by the last block)
    # act_ref:   (Cmax, HW)      VMEM scratch carrying the activation across the depth axis
    d = pl.program_id(1)
    n_blocks = pl.num_programs(1)
    cmax, hw = act_ref.shape
    cout = o_ref.shape[1]

    # First block of each image: load the (channel-padded) input into the carried activation.
    @pl.when(d == 0)
    def _():
        act_ref[...] = x_ref[0]

    act = act_ref[...]                       # (cmax, hw)
    w1t = w1t_ref[0]                         # (cout, cmax)

    # ---- 1x1 conv (channel mixing) ----
    if cmax >= 128 and cout >= 128:
        # Channel counts large enough to keep the MXU busy.
        h1 = jnp.dot(w1t, act, preferred_element_type=jnp.float32)
    else:
        # Tiny channels: MXU would be almost entirely padding -> VPU broadcast-MACs.
        h1 = jnp.zeros((cout, hw), jnp.float32)
        for ci in range(cmax):
            h1 = h1 + w1t[:, ci:ci + 1] * act[ci:ci + 1, :]

    # ---- depthwise 3x3, padding=1, stride=1 (XLU rolls + boundary masks) ----
    lane = jax.lax.broadcasted_iota(jnp.int32, (cout, hw), 1)   # flattened pixel index p
    col = lane % W                                              # w = p % W
    w2 = w2s_ref[0]                                             # (cout, 9), BN scale folded
    acc = jnp.zeros((cout, hw), jnp.float32)
    t = 0
    for dy in (-1, 0, 1):
        for dx in (-1, 0, 1):
            wt = w2[:, t:t + 1]                                 # (cout, 1)
            if dy == 0 and dx == 0:
                tap = h1
            else:
                # shifted[p] = h1[p + dy*W + dx]  (wrap-around positions masked off)
                shift_amt = (-(dy * W + dx)) % hw
                tap = pltpu.roll(h1, shift_amt, axis=1)
                conds = []
                if dy == -1:
                    conds.append(lane >= W)                     # needs h-1 >= 0
                elif dy == 1:
                    conds.append(lane < (H - 1) * W)            # needs h+1 <= H-1
                if dx == -1:
                    conds.append(col >= 1)                      # needs w-1 >= 0
                elif dx == 1:
                    conds.append(col < (W - 1))                 # needs w+1 <= W-1
                mask = conds[0]
                for extra in conds[1:]:
                    mask = jnp.logical_and(mask, extra)
                tap = jnp.where(mask, tap, 0.0)
            acc = acc + wt * tap
            t += 1

    # ---- BatchNorm (inference; scale already folded into w2) + ReLU ----
    y = jnp.maximum(acc + shift_ref[0], 0.0)

    # Carry the activation to the next block in VMEM (no HBM round-trip between blocks).
    if cout == cmax:
        act_ref[...] = y
    else:
        act_ref[0:cout, :] = y
        act_ref[cout:cmax, :] = jnp.zeros((cmax - cout, hw), jnp.float32)

    # Only the last block's result is written back to HBM.
    @pl.when(d == n_blocks - 1)
    def _():
        o_ref[0] = y.astype(o_ref.dtype)


def init_stream_params(key, in_channels, out_channels, depth):
    """Deterministic synthetic parameters for `depth` LightConv3x3 blocks."""
    eps = 1e-5
    params = []
    cin = in_channels
    for _ in range(depth):
        key, k1, k2, k3, k4 = jax.random.split(key, 5)
        w1 = jax.random.normal(k1, (cin, out_channels), jnp.float32) / jnp.sqrt(float(cin))
        w2 = jax.random.normal(k2, (3, 3, out_channels), jnp.float32) / 3.0
        gamma = 1.0 + 0.1 * jax.random.normal(k3, (out_channels,), jnp.float32)
        beta = 0.1 * jax.random.normal(k4, (out_channels,), jnp.float32)
        running_mean = jnp.zeros((out_channels,), jnp.float32)
        running_var = jnp.ones((out_channels,), jnp.float32)
        # Inference-mode BN folded to per-channel scale/shift (works for trained stats too).
        scale = gamma / jnp.sqrt(running_var + eps)
        shift = beta - running_mean * scale
        params.append((w1, w2, scale, shift))
        cin = out_channels
    return params


def _pack_stream_params(params, cmax):
    """Stack per-block weights for the fused kernel; fold BN scale into the 3x3 taps."""
    w1t_all, w2s_all, shift_all = [], [], []
    for (w1, w2, scale, shift) in params:
        cin_i, cout = w1.shape
        w1t = jnp.pad(w1.T, ((0, 0), (0, cmax - cin_i)))          # (cout, cmax), zero pad in
        w2s = (w2 * scale[None, None, :]).reshape(9, cout).T       # (cout, 9), scale folded
        w1t_all.append(w1t)
        w2s_all.append(w2s)
        shift_all.append(shift.reshape(cout, 1))
    return jnp.stack(w1t_all), jnp.stack(w2s_all), jnp.stack(shift_all)


def lightconv_stream(x_nchw, params):
    """Forward pass equivalent to LightConvStream (stride=1, no dropout, BN eval mode)."""
    N, Cin, H, W = x_nchw.shape
    cout = params[0][0].shape[1]
    depth = len(params)
    assert depth >= 1
    # Carried channel count: max of in/out, rounded to a sublane multiple, zero-padded.
    cmax = max(Cin, cout)
    cmax = ((cmax + 7) // 8) * 8

    w1t_all, w2s_all, shift_all = _pack_stream_params(params, cmax)

    HW = H * W
    x = x_nchw.reshape(N, Cin, HW)
    if Cin < cmax:
        x = jnp.pad(x, ((0, 0), (0, cmax - Cin), (0, 0)))

    out = pl.pallas_call(
        functools.partial(_stream_kernel, H=H, W=W),
        out_shape=jax.ShapeDtypeStruct((N, cout, HW), jnp.float32),
        grid_spec=pltpu.PrefetchScalarGridSpec(
            num_scalar_prefetch=0,
            grid=(N, depth),   # depth is the inner, state-carrying axis
            in_specs=[
                pl.BlockSpec((1, cmax, HW), lambda n, d: (n, 0, 0)),    # image (DMA once per n)
                pl.BlockSpec((1, cout, cmax), lambda n, d: (d, 0, 0)),  # per-block 1x1 weights
                pl.BlockSpec((1, cout, 9), lambda n, d: (d, 0, 0)),     # per-block dw taps
                pl.BlockSpec((1, cout, 1), lambda n, d: (d, 0, 0)),     # per-block BN shift
            ],
            out_specs=pl.BlockSpec((1, cout, HW), lambda n, d: (n, 0, 0)),
            scratch_shapes=[pltpu.VMEM((cmax, HW), jnp.float32)],
        ),
        compiler_params=pltpu.CompilerParams(
            dimension_semantics=("parallel", "arbitrary"),
            vmem_limit_bytes=32 * 1024 * 1024,  # explicit budget (safe on v5e/v6e/v7x)
        ),
    )(x, w1t_all, w2s_all, shift_all)

    return out.reshape(N, cout, H, W)


def _reference_stream(x_nchw, params):
    """Pure-JAX reference (same math) for a correctness check."""
    x = jnp.transpose(x_nchw, (0, 2, 3, 1))
    for (w1, w2, scale, shift) in params:
        cout = w1.shape[1]
        h = jnp.einsum('nhwc,cd->nhwd', x, w1)
        h = jax.lax.conv_general_dilated(
            h, w2.reshape(3, 3, 1, cout), window_strides=(1, 1), padding='SAME',
            dimension_numbers=('NHWC', 'HWIO', 'NHWC'), feature_group_count=cout)
        x = jnp.maximum(h * scale + shift, 0.0)
    return jnp.transpose(x, (0, 3, 1, 2))


if __name__ == "__main__":
    key = jax.random.PRNGKey(0)
    key, xk = jax.random.split(key)

    N, Cin, H, W = 2, 4, 16, 16
    Cout, depth = 8, 2

    x = jax.random.normal(xk, (N, Cin, H, W), jnp.float32)
    params = init_stream_params(key, Cin, Cout, depth)

    out = jax.block_until_ready(lightconv_stream(x, params))
    ref = jax.block_until_ready(_reference_stream(x, params))

    assert out.shape == (N, Cout, H, W)
    assert jnp.allclose(out, ref, atol=1e-4, rtol=1e-3), "Pallas output mismatch vs reference"

    print("KERNEL_OK")
</pallas_src>

<mosaic_0001>
module attributes {stable_mosaic.version = 11 : i64} {
  func.func @_stream_kernel(%arg0: i32, %arg1: i32, %arg2: memref<1x8x256xf32, #tpu.memory_space<vmem>>, %arg3: memref<1x8x8xf32, #tpu.memory_space<vmem>>, %arg4: memref<1x8x9xf32, #tpu.memory_space<vmem>>, %arg5: memref<1x8x1xf32, #tpu.memory_space<vmem>>, %arg6: memref<1x8x256xf32, #tpu.memory_space<vmem>>, %arg7: memref<8x256xf32, #tpu.memory_space<vmem>>) attributes {dimension_semantics = [#tpu.dimension_semantics<parallel>, #tpu.dimension_semantics<arbitrary>], iteration_bounds = array<i64: 2, 2>, scalar_prefetch = 0 : i64, scratch_operands = 1 : i64, tpu.core_type = #tpu.core_type<tc>, window_params = [{transform_indices = @transform_0, window_bounds = array<i64: 1, 8, 256>}, {transform_indices = @transform_1, window_bounds = array<i64: 1, 8, 8>}, {transform_indices = @transform_2, window_bounds = array<i64: 1, 8, 9>}, {transform_indices = @transform_3, window_bounds = array<i64: 1, 8, 1>}, {transform_indices = @transform_4, window_bounds = array<i64: 1, 8, 256>}]} {
    %c0_i32 = arith.constant 0 : i32
    %0 = arith.cmpi eq, %arg1, %c0_i32 : i32
    %1 = arith.extui %0 : i1 to i32
    %c0_i32_0 = arith.constant 0 : i32
    %2 = arith.cmpi ne, %1, %c0_i32_0 : i32
    scf.if %2 {
      %c0_43 = arith.constant 0 : index
      %c0_44 = arith.constant 0 : index
      %c0_45 = arith.constant 0 : index
      %173 = vector.load %arg2[%c0_43, %c0_44, %c0_45] : memref<1x8x256xf32, #tpu.memory_space<vmem>>, vector<1x8x256xf32>
      %174 = vector.shape_cast %173 : vector<1x8x256xf32> to vector<8x256xf32>
      %c0_46 = arith.constant 0 : index
      %c0_47 = arith.constant 0 : index
      %175 = vector.load %arg7[%c0_46, %c0_47] : memref<8x256xf32, #tpu.memory_space<vmem>>, vector<8x256xf32>
      tpu.vector_store %arg7[%c0_46, %c0_47], %174 {strides = array<i32>} : memref<8x256xf32, #tpu.memory_space<vmem>>, vector<8x256xf32>,
    } else {
    }
    %c0 = arith.constant 0 : index
    %c0_1 = arith.constant 0 : index
    %3 = vector.load %arg7[%c0, %c0_1] : memref<8x256xf32, #tpu.memory_space<vmem>>, vector<8x256xf32>
    %c0_2 = arith.constant 0 : index
    %c0_3 = arith.constant 0 : index
    %c0_4 = arith.constant 0 : index
    %4 = vector.load %arg3[%c0_2, %c0_3, %c0_4] : memref<1x8x8xf32, #tpu.memory_space<vmem>>, vector<1x8x8xf32>
    %5 = vector.shape_cast %4 : vector<1x8x8xf32> to vector<8x8xf32>
    %cst = arith.constant 0.000000e+00 : f32
    %6 = vector.broadcast %cst : f32 to vector<8x256xf32>
    %7 = vector.extract_strided_slice %5 {offsets = [0, 0], sizes = [8, 1], strides = [1, 1]} : vector<8x8xf32> to vector<8x1xf32>
    %8 = vector.extract_strided_slice %3 {offsets = [0, 0], sizes = [1, 256], strides = [1, 1]} : vector<8x256xf32> to vector<1x256xf32>
    %9 = vector.broadcast %7 : vector<8x1xf32> to vector<8x256xf32>
    %10 = vector.broadcast %8 : vector<1x256xf32> to vector<8x256xf32>
    %11 = arith.mulf %9, %10 : vector<8x256xf32>
    %12 = arith.addf %6, %11 : vector<8x256xf32>
    %13 = vector.extract_strided_slice %5 {offsets = [0, 1], sizes = [8, 1], strides = [1, 1]} : vector<8x8xf32> to vector<8x1xf32>
    %14 = vector.extract_strided_slice %3 {offsets = [1, 0], sizes = [1, 256], strides = [1, 1]} : vector<8x256xf32> to vector<1x256xf32>
    %15 = vector.broadcast %13 : vector<8x1xf32> to vector<8x256xf32>
    %16 = vector.broadcast %14 : vector<1x256xf32> to vector<8x256xf32>
    %17 = arith.mulf %15, %16 : vector<8x256xf32>
    %18 = arith.addf %12, %17 : vector<8x256xf32>
    %19 = vector.extract_strided_slice %5 {offsets = [0, 2], sizes = [8, 1], strides = [1, 1]} : vector<8x8xf32> to vector<8x1xf32>
    %20 = vector.extract_strided_slice %3 {offsets = [2, 0], sizes = [1, 256], strides = [1, 1]} : vector<8x256xf32> to vector<1x256xf32>
    %21 = vector.broadcast %19 : vector<8x1xf32> to vector<8x256xf32>
    %22 = vector.broadcast %20 : vector<1x256xf32> to vector<8x256xf32>
    %23 = arith.mulf %21, %22 : vector<8x256xf32>
    %24 = arith.addf %18, %23 : vector<8x256xf32>
    %25 = vector.extract_strided_slice %5 {offsets = [0, 3], sizes = [8, 1], strides = [1, 1]} : vector<8x8xf32> to vector<8x1xf32>
    %26 = vector.extract_strided_slice %3 {offsets = [3, 0], sizes = [1, 256], strides = [1, 1]} : vector<8x256xf32> to vector<1x256xf32>
    %27 = vector.broadcast %25 : vector<8x1xf32> to vector<8x256xf32>
    %28 = vector.broadcast %26 : vector<1x256xf32> to vector<8x256xf32>
    %29 = arith.mulf %27, %28 : vector<8x256xf32>
    %30 = arith.addf %24, %29 : vector<8x256xf32>
    %31 = vector.extract_strided_slice %5 {offsets = [0, 4], sizes = [8, 1], strides = [1, 1]} : vector<8x8xf32> to vector<8x1xf32>
    %32 = vector.extract_strided_slice %3 {offsets = [4, 0], sizes = [1, 256], strides = [1, 1]} : vector<8x256xf32> to vector<1x256xf32>
    %33 = vector.broadcast %31 : vector<8x1xf32> to vector<8x256xf32>
    %34 = vector.broadcast %32 : vector<1x256xf32> to vector<8x256xf32>
    %35 = arith.mulf %33, %34 : vector<8x256xf32>
    %36 = arith.addf %30, %35 : vector<8x256xf32>
    %37 = vector.extract_strided_slice %5 {offsets = [0, 5], sizes = [8, 1], strides = [1, 1]} : vector<8x8xf32> to vector<8x1xf32>
    %38 = vector.extract_strided_slice %3 {offsets = [5, 0], sizes = [1, 256], strides = [1, 1]} : vector<8x256xf32> to vector<1x256xf32>
    %39 = vector.broadcast %37 : vector<8x1xf32> to vector<8x256xf32>
    %40 = vector.broadcast %38 : vector<1x256xf32> to vector<8x256xf32>
    %41 = arith.mulf %39, %40 : vector<8x256xf32>
    %42 = arith.addf %36, %41 : vector<8x256xf32>
    %43 = vector.extract_strided_slice %5 {offsets = [0, 6], sizes = [8, 1], strides = [1, 1]} : vector<8x8xf32> to vector<8x1xf32>
    %44 = vector.extract_strided_slice %3 {offsets = [6, 0], sizes = [1, 256], strides = [1, 1]} : vector<8x256xf32> to vector<1x256xf32>
    %45 = vector.broadcast %43 : vector<8x1xf32> to vector<8x256xf32>
    %46 = vector.broadcast %44 : vector<1x256xf32> to vector<8x256xf32>
    %47 = arith.mulf %45, %46 : vector<8x256xf32>
    %48 = arith.addf %42, %47 : vector<8x256xf32>
    %49 = vector.extract_strided_slice %5 {offsets = [0, 7], sizes = [8, 1], strides = [1, 1]} : vector<8x8xf32> to vector<8x1xf32>
    %50 = vector.extract_strided_slice %3 {offsets = [7, 0], sizes = [1, 256], strides = [1, 1]} : vector<8x256xf32> to vector<1x256xf32>
    %51 = vector.broadcast %49 : vector<8x1xf32> to vector<8x256xf32>
    %52 = vector.broadcast %50 : vector<1x256xf32> to vector<8x256xf32>
    %53 = arith.mulf %51, %52 : vector<8x256xf32>
    %54 = arith.addf %48, %53 : vector<8x256xf32>
    %55 = tpu.iota {dimensions = array<i32: 1>} : vector<8x256xi32>
    %c16_i32 = arith.constant 16 : i32
    %c0_i32_5 = arith.constant 0 : i32
    %56 = arith.cmpi eq, %c16_i32, %c0_i32_5 : i32
    %c1_i32 = arith.constant 1 : i32
    %57 = arith.select %56, %c1_i32, %c16_i32 : i32
    %58 = vector.broadcast %57 : i32 to vector<8x256xi32>
    %59 = arith.remsi %55, %58 : vector<8x256xi32>
    %c0_i32_6 = arith.constant 0 : i32
    %60 = vector.broadcast %c0_i32_6 : i32 to vector<8x256xi32>
    %61 = arith.cmpi ne, %59, %60 : vector<8x256xi32>
    %c0_i32_7 = arith.constant 0 : i32
    %62 = vector.broadcast %c0_i32_7 : i32 to vector<8x256xi32>
    %63 = arith.cmpi slt, %59, %62 : vector<8x256xi32>
    %c0_i32_8 = arith.constant 0 : i32
    %64 = arith.cmpi slt, %57, %c0_i32_8 : i32
    %65 = vector.broadcast %64 : i1 to vector<8x256xi1>
    %66 = vector.broadcast %65 : vector<8x256xi1> to vector<8x256xi1>
    %67 = arith.xori %63, %66 : vector<8x256xi1>
    %68 = arith.andi %67, %61 : vector<8x256xi1>
    %69 = vector.broadcast %57 : i32 to vector<8x256xi32>
    %70 = arith.addi %59, %69 : vector<8x256xi32>
    %71 = arith.select %68, %70, %59 : vector<8x256xi1>, vector<8x256xi32>
    %c0_9 = arith.constant 0 : index
    %c0_10 = arith.constant 0 : index
    %c0_11 = arith.constant 0 : index
    %72 = vector.load %arg4[%c0_9, %c0_10, %c0_11] : memref<1x8x9xf32, #tpu.memory_space<vmem>>, vector<1x8x9xf32>
    %73 = vector.shape_cast %72 : vector<1x8x9xf32> to vector<8x9xf32>
    %cst_12 = arith.constant 0.000000e+00 : f32
    %74 = vector.broadcast %cst_12 : f32 to vector<8x256xf32>
    %75 = vector.extract_strided_slice %73 {offsets = [0, 0], sizes = [8, 1], strides = [1, 1]} : vector<8x9xf32> to vector<8x1xf32>
    %c17_i32 = arith.constant 17 : i32
    %76 = tpu.dynamic_rotate %54 by %c17_i32 dim 1 : vector<8x256xf32>, i32 -> vector<8x256xf32>
    %c16_i32_13 = arith.constant 16 : i32
    %77 = vector.broadcast %c16_i32_13 : i32 to vector<8x256xi32>
    %78 = arith.cmpi sge, %55, %77 : vector<8x256xi32>
    %c1_i32_14 = arith.constant 1 : i32
    %79 = vector.broadcast %c1_i32_14 : i32 to vector<8x256xi32>
    %80 = arith.cmpi sge, %71, %79 : vector<8x256xi32>
    %81 = arith.andi %78, %80 : vector<8x256xi1>
    %cst_15 = arith.constant 0.000000e+00 : f32
    %82 = vector.broadcast %cst_15 : f32 to vector<8x256xf32>
    %83 = arith.select %81, %76, %82 : vector<8x256xi1>, vector<8x256xf32>
    %84 = vector.broadcast %75 : vector<8x1xf32> to vector<8x256xf32>
    %85 = arith.mulf %84, %83 : vector<8x256xf32>
    %86 = arith.addf %74, %85 : vector<8x256xf32>
    %87 = vector.extract_strided_slice %73 {offsets = [0, 1], sizes = [8, 1], strides = [1, 1]} : vector<8x9xf32> to vector<8x1xf32>
    %c16_i32_16 = arith.constant 16 : i32
    %88 = tpu.dynamic_rotate %54 by %c16_i32_16 dim 1 : vector<8x256xf32>, i32 -> vector<8x256xf32>
    %c16_i32_17 = arith.constant 16 : i32
    %89 = vector.broadcast %c16_i32_17 : i32 to vector<8x256xi32>
    %90 = arith.cmpi sge, %55, %89 : vector<8x256xi32>
    %cst_18 = arith.constant 0.000000e+00 : f32
    %91 = vector.broadcast %cst_18 : f32 to vector<8x256xf32>
    %92 = arith.select %90, %88, %91 : vector<8x256xi1>, vector<8x256xf32>
    %93 = vector.broadcast %87 : vector<8x1xf32> to vector<8x256xf32>
    %94 = arith.mulf %93, %92 : vector<8x256xf32>
    %95 = arith.addf %86, %94 : vector<8x256xf32>
    %96 = vector.extract_strided_slice %73 {offsets = [0, 2], sizes = [8, 1], strides = [1, 1]} : vector<8x9xf32> to vector<8x1xf32>
    %c15_i32 = arith.constant 15 : i32
    %97 = tpu.dynamic_rotate %54 by %c15_i32 dim 1 : vector<8x256xf32>, i32 -> vector<8x256xf32>
    %c16_i32_19 = arith.constant 16 : i32
    %98 = vector.broadcast %c16_i32_19 : i32 to vector<8x256xi32>
    %99 = arith.cmpi sge, %55, %98 : vector<8x256xi32>
    %c15_i32_20 = arith.constant 15 : i32
    %100 = vector.broadcast %c15_i32_20 : i32 to vector<8x256xi32>
    %101 = arith.cmpi slt, %71, %100 : vector<8x256xi32>
    %102 = arith.andi %99, %101 : vector<8x256xi1>
    %cst_21 = arith.constant 0.000000e+00 : f32
    %103 = vector.broadcast %cst_21 : f32 to vector<8x256xf32>
    %104 = arith.select %102, %97, %103 : vector<8x256xi1>, vector<8x256xf32>
    %105 = vector.broadcast %96 : vector<8x1xf32> to vector<8x256xf32>
    %106 = arith.mulf %105, %104 : vector<8x256xf32>
    %107 = arith.addf %95, %106 : vector<8x256xf32>
    %108 = vector.extract_strided_slice %73 {offsets = [0, 3], sizes = [8, 1], strides = [1, 1]} : vector<8x9xf32> to vector<8x1xf32>
    %c1_i32_22 = arith.constant 1 : i32
    %109 = tpu.dynamic_rotate %54 by %c1_i32_22 dim 1 : vector<8x256xf32>, i32 -> vector<8x256xf32>
    %c1_i32_23 = arith.constant 1 : i32
    %110 = vector.broadcast %c1_i32_23 : i32 to vector<8x256xi32>
    %111 = arith.cmpi sge, %71, %110 : vector<8x256xi32>
    %cst_24 = arith.constant 0.000000e+00 : f32
    %112 = vector.broadcast %cst_24 : f32 to vector<8x256xf32>
    %113 = arith.select %111, %109, %112 : vector<8x256xi1>, vector<8x256xf32>
    %114 = vector.broadcast %108 : vector<8x1xf32> to vector<8x256xf32>
    %115 = arith.mulf %114, %113 : vector<8x256xf32>
    %116 = arith.addf %107, %115 : vector<8x256xf32>
    %117 = vector.extract_strided_slice %73 {offsets = [0, 4], sizes = [8, 1], strides = [1, 1]} : vector<8x9xf32> to vector<8x1xf32>
    %118 = vector.broadcast %117 : vector<8x1xf32> to vector<8x256xf32>
    %119 = arith.mulf %118, %54 : vector<8x256xf32>
    %120 = arith.addf %116, %119 : vector<8x256xf32>
    %121 = vector.extract_strided_slice %73 {offsets = [0, 5], sizes = [8, 1], strides = [1, 1]} : vector<8x9xf32> to vector<8x1xf32>
    %c255_i32 = arith.constant 255 : i32
    %122 = tpu.dynamic_rotate %54 by %c255_i32 dim 1 : vector<8x256xf32>, i32 -> vector<8x256xf32>
    %c15_i32_25 = arith.constant 15 : i32
    %123 = vector.broadcast %c15_i32_25 : i32 to vector<8x256xi32>
    %124 = arith.cmpi slt, %71, %123 : vector<8x256xi32>
    %cst_26 = arith.constant 0.000000e+00 : f32
    %125 = vector.broadcast %cst_26 : f32 to vector<8x256xf32>
    %126 = arith.select %124, %122, %125 : vector<8x256xi1>, vector<8x256xf32>
    %127 = vector.broadcast %121 : vector<8x1xf32> to vector<8x256xf32>
    %128 = arith.mulf %127, %126 : vector<8x256xf32>
    %129 = arith.addf %120, %128 : vector<8x256xf32>
    %130 = vector.extract_strided_slice %73 {offsets = [0, 6], sizes = [8, 1], strides = [1, 1]} : vector<8x9xf32> to vector<8x1xf32>
    %c241_i32 = arith.constant 241 : i32
    %131 = tpu.dynamic_rotate %54 by %c241_i32 dim 1 : vector<8x256xf32>, i32 -> vector<8x256xf32>
    %c240_i32 = arith.constant 240 : i32
    %132 = vector.broadcast %c240_i32 : i32 to vector<8x256xi32>
    %133 = arith.cmpi slt, %55, %132 : vector<8x256xi32>
    %c1_i32_27 = arith.constant 1 : i32
    %134 = vector.broadcast %c1_i32_27 : i32 to vector<8x256xi32>
    %135 = arith.cmpi sge, %71, %134 : vector<8x256xi32>
    %136 = arith.andi %133, %135 : vector<8x256xi1>
    %cst_28 = arith.constant 0.000000e+00 : f32
    %137 = vector.broadcast %cst_28 : f32 to vector<8x256xf32>
    %138 = arith.select %136, %131, %137 : vector<8x256xi1>, vector<8x256xf32>
    %139 = vector.broadcast %130 : vector<8x1xf32> to vector<8x256xf32>
    %140 = arith.mulf %139, %138 : vector<8x256xf32>
    %141 = arith.addf %129, %140 : vector<8x256xf32>
    %142 = vector.extract_strided_slice %73 {offsets = [0, 7], sizes = [8, 1], strides = [1, 1]} : vector<8x9xf32> to vector<8x1xf32>
    %c240_i32_29 = arith.constant 240 : i32
    %143 = tpu.dynamic_rotate %54 by %c240_i32_29 dim 1 : vector<8x256xf32>, i32 -> vector<8x256xf32>
    %c240_i32_30 = arith.constant 240 : i32
    %144 = vector.broadcast %c240_i32_30 : i32 to vector<8x256xi32>
    %145 = arith.cmpi slt, %55, %144 : vector<8x256xi32>
    %cst_31 = arith.constant 0.000000e+00 : f32
    %146 = vector.broadcast %cst_31 : f32 to vector<8x256xf32>
    %147 = arith.select %145, %143, %146 : vector<8x256xi1>, vector<8x256xf32>
    %148 = vector.broadcast %142 : vector<8x1xf32> to vector<8x256xf32>
    %149 = arith.mulf %148, %147 : vector<8x256xf32>
    %150 = arith.addf %141, %149 : vector<8x256xf32>
    %151 = vector.extract_strided_slice %73 {offsets = [0, 8], sizes = [8, 1], strides = [1, 1]} : vector<8x9xf32> to vector<8x1xf32>
    %c239_i32 = arith.constant 239 : i32
    %152 = tpu.dynamic_rotate %54 by %c239_i32 dim 1 : vector<8x256xf32>, i32 -> vector<8x256xf32>
    %c240_i32_32 = arith.constant 240 : i32
    %153 = vector.broadcast %c240_i32_32 : i32 to vector<8x256xi32>
    %154 = arith.cmpi slt, %55, %153 : vector<8x256xi32>
    %c15_i32_33 = arith.constant 15 : i32
    %155 = vector.broadcast %c15_i32_33 : i32 to vector<8x256xi32>
    %156 = arith.cmpi slt, %71, %155 : vector<8x256xi32>
    %157 = arith.andi %154, %156 : vector<8x256xi1>
    %cst_34 = arith.constant 0.000000e+00 : f32
    %158 = vector.broadcast %cst_34 : f32 to vector<8x256xf32>
    %159 = arith.select %157, %152, %158 : vector<8x256xi1>, vector<8x256xf32>
    %160 = vector.broadcast %151 : vector<8x1xf32> to vector<8x256xf32>
    %161 = arith.mulf %160, %159 : vector<8x256xf32>
    %162 = arith.addf %150, %161 : vector<8x256xf32>
    %c0_35 = arith.constant 0 : index
    %c0_36 = arith.constant 0 : index
    %c0_37 = arith.constant 0 : index
    %163 = vector.load %arg5[%c0_35, %c0_36, %c0_37] : memref<1x8x1xf32, #tpu.memory_space<vmem>>, vector<1x8x1xf32>
    %164 = vector.shape_cast %163 : vector<1x8x1xf32> to vector<8x1xf32>
    %165 = vector.broadcast %164 : vector<8x1xf32> to vector<8x256xf32>
    %166 = arith.addf %162, %165 : vector<8x256xf32>
    %cst_38 = arith.constant 0.000000e+00 : f32
    %167 = vector.broadcast %cst_38 : f32 to vector<8x256xf32>
    %168 = arith.maximumf %166, %167 : vector<8x256xf32>
    %c0_39 = arith.constant 0 : index
    %c0_40 = arith.constant 0 : index
    %169 = vector.load %arg7[%c0_39, %c0_40] : memref<8x256xf32, #tpu.memory_space<vmem>>, vector<8x256xf32>
    tpu.vector_store %arg7[%c0_39, %c0_40], %168 {strides = array<i32>} : memref<8x256xf32, #tpu.memory_space<vmem>>, vector<8x256xf32>,
    %c1_i32_41 = arith.constant 1 : i32
    %170 = arith.cmpi eq, %arg1, %c1_i32_41 : i32
    %171 = arith.extui %170 : i1 to i32
    %c0_i32_42 = arith.constant 0 : i32
    %172 = arith.cmpi ne, %171, %c0_i32_42 : i32
    scf.if %172 {
      %c0_43 = arith.constant 0 : index
      %c0_44 = arith.constant 0 : index
      %c0_45 = arith.constant 0 : index
      %173 = vector.load %arg6[%c0_43, %c0_44, %c0_45] : memref<1x8x256xf32, #tpu.memory_space<vmem>>, vector<1x8x256xf32>
      %174 = vector.shape_cast %173 : vector<1x8x256xf32> to vector<8x256xf32>
      %175 = vector.shape_cast %168 : vector<8x256xf32> to vector<1x8x256xf32>
      tpu.vector_store %arg6[%c0_43, %c0_44, %c0_45], %175 {strides = array<i32>} : memref<1x8x256xf32, #tpu.memory_space<vmem>>, vector<1x8x256xf32>,
    } else {
    }
    return
  }
  func.func @transform_0(%arg0: i32, %arg1: i32) -> (i32, i32, i32) {
    %c0_i32 = arith.constant 0 : i32
    %c0_i32_0 = arith.constant 0 : i32
    %c0_i32_1 = arith.constant 0 : i32
    return %arg0, %c0_i32, %c0_i32_0 : i32, i32, i32
  }
  func.func @transform_1(%arg0: i32, %arg1: i32) -> (i32, i32, i32) {
    %c0_i32 = arith.constant 0 : i32
    %c0_i32_0 = arith.constant 0 : i32
    %c0_i32_1 = arith.constant 0 : i32
    return %arg1, %c0_i32, %c0_i32_0 : i32, i32, i32
  }
  func.func @transform_2(%arg0: i32, %arg1: i32) -> (i32, i32, i32) {
    %c0_i32 = arith.constant 0 : i32
    %c0_i32_0 = arith.constant 0 : i32
    %c0_i32_1 = arith.constant 0 : i32
    return %arg1, %c0_i32, %c0_i32_0 : i32, i32, i32
  }
  func.func @transform_3(%arg0: i32, %arg1: i32) -> (i32, i32, i32) {
    %c0_i32 = arith.constant 0 : i32
    %c0_i32_0 = arith.constant 0 : i32
    %c0_i32_1 = arith.constant 0 : i32
    return %arg1, %c0_i32, %c0_i32_0 : i32, i32, i32
  }
  func.func @transform_4(%arg0: i32, %arg1: i32) -> (i32, i32, i32) {
    %c0_i32 = arith.constant 0 : i32
    %c0_i32_0 = arith.constant 0 : i32
    %c0_i32_1 = arith.constant 0 : i32
    return %arg0, %c0_i32, %c0_i32_0 : i32, i32, i32
  }
}

</mosaic_0001>

<llo_original>
// kernel: tpu_custom_call.1
$region0: #{tpu_custom_call.1}
  #allocation0 [shape = 'u32[]', space=smem, size = 0x4, offset = 0x4, fixed_abs, tag = 'smem constant byte address 0x4 - core index']
  #allocation1 [shape = 'u32[72,128]{1,0:T(1,128)}', space=vmem, size = 0x9000, scoped, tag = 'internal scratch']
  #allocation2 [shape = 'f32[8,256]{1,0:T(8,128)}', space=vmem, size = 0x2000, scoped, tag = 'scratch operand']
  %s0 = inlined_call_operand.hbm [shape: f32[2,8,256], index: 0, kind: input, shape index: {}]
  %s1 = inlined_call_operand.vmem [shape: f32[2,8,8], index: 1, kind: input, shape index: {}]
  %s2 = inlined_call_operand.hbm [shape: f32[2,8,9], index: 2, kind: input, shape index: {}]
  %s3 = inlined_call_operand.vmem [shape: f32[2,8,1], index: 3, kind: input, shape index: {}]
  %s4 = inlined_call_operand.hbm [shape: f32[2,8,256], index: 4, kind: output, shape index: {}]
  %s5 = sld [smem:[#allocation0]]
  $region65: #{tpu_custom_call.1} parent=0
    _
  %s7 = ssub.s32 1, %s5
  %s8 = scalar_select 0, %s7, %s5
  $region1: #{tpu_custom_call.1} parent=0
    #allocation3 [shape = 'u8[16384]{0}', space=vmem, size = 0x4000, scoped, tag = 'input window, operand 0']
    #allocation4 [shape = 's32[2]{0}', space=sflag, size = 0x8, scoped, tag = 'scoped memory for tpu_custom_call.1']
    #allocation5 [shape = 's32[2]{0}', space=sflag, size = 0x8, scoped, tag = 'scoped memory for tpu_custom_call.1']
    #allocation6 [shape = 'u8[8192]{0}', space=vmem, size = 0x2000, scoped, tag = 'input window, operand 2']
    #allocation7 [shape = 's32[2]{0}', space=sflag, size = 0x8, scoped, tag = 'scoped memory for tpu_custom_call.1']
    #allocation8 [shape = 'u8[16384]{0}', space=vmem, size = 0x4000, scoped, tag = 'output window, operand 0']
    %9 = vsyncpa [#allocation4], 0
    %s10 = scalar_lea.sflag [#allocation4], 1
    %11 = vsyncpa %s10, 0
    %12 = vsyncpa [#allocation7], 0
    %s13 = scalar_lea.sflag [#allocation7], 1
    %14 = vsyncpa %s13, 0
    %15 = vsyncpa [#allocation5], 0
    %s16 = scalar_lea.sflag [#allocation5], 1
    %17 = vsyncpa %s16, 0
    loop: start=0, step=1, limit=6
    $region2: #{tpu_custom_call.1} parent=1 // loop_pre_header
      _
    $region3: #{tpu_custom_call.1} parent=1 // loop_header
      %s19 = sphi 0, %s23
      %p20 = scmp.ge.s32.totalorder %s19, 6
      %s26 = sphi 0, %s38
      %s27 = sphi 0, %s34
      %s28 = sphi 0, %s26
      %s29 = sphi 0, %s27
      %s30 = sphi 0, %s28
      %s31 = sphi 0, %s29
      %s41 = sphi 0, %s43
      %s44 = sphi 0, %s41
      %s45 = sphi 0, %s44
      %s61 = sphi 0, %s45
      %s67 = sphi 0, %s69
      %s70 = sphi 0, %s67
      %s71 = sphi 0, %s70
      %s87 = sphi 0, %s71
      %s93 = sphi 0, %s95
      %s96 = sphi 0, %s93
      %s97 = sphi 0, %s96
      %s113 = sphi 0, %s97
      %s119 = sphi 0, %s121
      %s122 = sphi 0, %s119
      %s123 = sphi 0, %s122
      %s139 = sphi 0, %s123
      %s145 = sphi 0, %s147
      %s148 = sphi 0, %s145
      %s149 = sphi 0, %s148
      %s165 = sphi 0, %s149
    $region4: #{tpu_custom_call.1} parent=1 // loop_header_branch
      %22 = sbr.rel (%p20) target = $region8
    $region5: #{tpu_custom_call.1} parent=1 // loop_body
      %s24 = ssub.s32 %s19, 1
      %s25 = ssub.s32 %s19, 2
      %s32 = sadd.s32 1, %s27
      %p33 = scmp.ge.s32.totalorder %s32, 2
      %s34 = scalar_select %p33, 0, %s32
      %s35 = sadd.s32 1, %s26
      %s36 = scalar_select %p33, %s35, %s26
      %p37 = scmp.ge.s32.totalorder %s36, 2
      %s38 = scalar_select %p37, 0, %s36
      %s39 = ssub.s32 %s26, %s38
      %p40 = scmp.eq.s32.totalorder %s39, 0
      %s42 = sadd.s32 %s41, 1
      %s43 = scalar_select %p40, %s41, %s42
      %p46 = pneg %p40
      %p47 = scmp.eq.s32.totalorder %s19, 3
      %p48 = por %p46, %p47
      %p49 = scmp.ne.s32.totalorder %s41, %s44
      %p50 = scmp.eq.s32.totalorder %s19, 0
      %p51 = por %p49, %p50
      %p52 = scmp.ne.s32.totalorder %s41, %s44
      %p53 = scmp.eq.s32.totalorder %s24, 3
      %p54 = por %p52, %p53
      %p55 = scmp.ne.s32.totalorder %s44, %s45
      %p56 = scmp.eq.s32.totalorder %s24, 0
      %p57 = por %p55, %p56
      %p58 = scmp.ne.s32.totalorder %s44, %s45
      %p59 = scmp.eq.s32.totalorder %s25, 3
      %p60 = por %p58, %p59
      %p62 = scmp.ne.s32.totalorder %s45, %s61
      %p63 = scmp.eq.s32.totalorder %s25, 0
      %p64 = por %p62, %p63
      %s65 = ssub.s32 %s27, %s34
      %p66 = scmp.eq.s32.totalorder %s65, 0
      %s68 = sadd.s32 %s67, 1
      %s69 = scalar_select %p66, %s67, %s68
      %p72 = pneg %p66
      %p73 = scmp.eq.s32.totalorder %s19, 3
      %p74 = por %p72, %p73
      %p75 = scmp.ne.s32.totalorder %s67, %s70
      %p76 = scmp.eq.s32.totalorder %s19, 0
      %p77 = por %p75, %p76
      %p78 = scmp.ne.s32.totalorder %s67, %s70
      %p79 = scmp.eq.s32.totalorder %s24, 3
      %p80 = por %p78, %p79
      %p81 = scmp.ne.s32.totalorder %s70, %s71
      %p82 = scmp.eq.s32.totalorder %s24, 0
      %p83 = por %p81, %p82
      %p84 = scmp.ne.s32.totalorder %s70, %s71
      %p85 = scmp.eq.s32.totalorder %s25, 3
      %p86 = por %p84, %p85
      %p88 = scmp.ne.s32.totalorder %s71, %s87
      %p89 = scmp.eq.s32.totalorder %s25, 0
      %p90 = por %p88, %p89
      %s91 = ssub.s32 %s27, %s34
      %p92 = scmp.eq.s32.totalorder %s91, 0
      %s94 = sadd.s32 %s93, 1
      %s95 = scalar_select %p92, %s93, %s94
      %p98 = pneg %p92
      %p99 = scmp.eq.s32.totalorder %s19, 3
      %p100 = por %p98, %p99
      %p101 = scmp.ne.s32.totalorder %s93, %s96
      %p102 = scmp.eq.s32.totalorder %s19, 0
      %p103 = por %p101, %p102
      %p104 = scmp.ne.s32.totalorder %s93, %s96
      %p105 = scmp.eq.s32.totalorder %s24, 3
      %p106 = por %p104, %p105
      %p107 = scmp.ne.s32.totalorder %s96, %s97
      %p108 = scmp.eq.s32.totalorder %s24, 0
      %p109 = por %p107, %p108
      %p110 = scmp.ne.s32.totalorder %s96, %s97
      %p111 = scmp.eq.s32.totalorder %s25, 3
      %p112 = por %p110, %p111
      %p114 = scmp.ne.s32.totalorder %s97, %s113
      %p115 = scmp.eq.s32.totalorder %s25, 0
      %p116 = por %p114, %p115
      %s117 = ssub.s32 %s27, %s34
      %p118 = scmp.eq.s32.totalorder %s117, 0
      %s120 = sadd.s32 %s119, 1
      %s121 = scalar_select %p118, %s119, %s120
      %p124 = pneg %p118
      %p125 = scmp.eq.s32.totalorder %s19, 3
      %p126 = por %p124, %p125
      %p127 = scmp.ne.s32.totalorder %s119, %s122
      %p128 = scmp.eq.s32.totalorder %s19, 0
      %p129 = por %p127, %p128
      %p130 = scmp.ne.s32.totalorder %s119, %s122
      %p131 = scmp.eq.s32.totalorder %s24, 3
      %p132 = por %p130, %p131
      %p133 = scmp.ne.s32.totalorder %s122, %s123
      %p134 = scmp.eq.s32.totalorder %s24, 0
      %p135 = por %p133, %p134
      %p136 = scmp.ne.s32.totalorder %s122, %s123
      %p137 = scmp.eq.s32.totalorder %s25, 3
      %p138 = por %p136, %p137
      %p140 = scmp.ne.s32.totalorder %s123, %s139
      %p141 = scmp.eq.s32.totalorder %s25, 0
      %p142 = por %p140, %p141
      %s143 = ssub.s32 %s26, %s38
      %p144 = scmp.eq.s32.totalorder %s143, 0
      %s146 = sadd.s32 %s145, 1
      %s147 = scalar_select %p144, %s145, %s146
      %p150 = pneg %p144
      %p151 = scmp.eq.s32.totalorder %s19, 3
      %p152 = por %p150, %p151
      %p153 = scmp.ne.s32.totalorder %s145, %s148
      %p154 = scmp.eq.s32.totalorder %s19, 0
      %p155 = por %p153, %p154
      %p156 = scmp.ne.s32.totalorder %s145, %s148
      %p157 = scmp.eq.s32.totalorder %s24, 3
      %p158 = por %p156, %p157
      %p159 = scmp.ne.s32.totalorder %s148, %s149
      %p160 = scmp.eq.s32.totalorder %s24, 0
      %p161 = por %p159, %p160
      %p162 = scmp.ne.s32.totalorder %s148, %s149
      %p163 = scmp.eq.s32.totalorder %s25, 3
      %p164 = por %p162, %p163
      %p166 = scmp.ne.s32.totalorder %s149, %s165
      %p167 = scmp.eq.s32.totalorder %s25, 0
      %p168 = por %p166, %p167
      %p169 = scmp.le.s32.totalorder 1, %s19
      %p170 = scmp.lt.s32.totalorder %s19, 5
      %p171 = pnand %p169, %p170
      %p172 = pneg %p171
      // Predicated region
      $region9: #{tpu_custom_call.1} parent=5 // pred_check
        _
      $region10: #{tpu_custom_call.1} parent=5 // pred_check_branch
        %174 = sbr.rel (%p171) target = $region12
      $region11: #{tpu_custom_call.1} parent=5 // pred_region
        %s175 = ssub.s32 %s19, 1
      $region12: #{tpu_custom_call.1} parent=5 // pred_fallthru
        _
      %p176 = scmp.lt.s32.totalorder %s19, 4
      // Predicated region
      $region13: #{tpu_custom_call.1} parent=5 // pred_check
        %p177 = pneg %p176
      $region14: #{tpu_custom_call.1} parent=5 // pred_check_branch
        %179 = sbr.rel (%p177) target = $region16
      $region15: #{tpu_custom_call.1} parent=5 // pred_region
        // Predicated region
        $region17: #{tpu_custom_call.1} parent=15 // pred_check
          %p180 = pneg %p51
        $region18: #{tpu_custom_call.1} parent=15 // pred_check_branch
          %182 = sbr.rel (%p180) target = $region20
        $region19: #{tpu_custom_call.1} parent=15 // pred_region
          %s183 = sand.u32 %s41, 1
          %s184 = scalar_lea.sflag [#allocation4], %s183
          %s185 = sand.u32 %s41, 1
          %s186 = smul.addr %s185, 16
          %s187 = scalar_lea.vmem [#allocation3], %s186
          %189 = vsyncadd %s184, 0
          %s190 = smul.addr %s26, 2
          %s191 = smul.addr %s190, 8
          %s192 = scalar_lea.hbm %s0, %s191
          %s194 = sshll.u32 %s192, 4
          %s195 = int_to_ptr.hbm [resolvable:$true] %s194
          %s196 = sshll.u32 %s187, 4
          %s197 = int_to_ptr.vmem [resolvable:$true] %s196
          %199 = dma.hbm_to_vmem [thread:$0]  %s195, 256, %s197, %s184
        $region20: #{tpu_custom_call.1} parent=15 // pred_fallthru
          _
        // Predicated region
        $region21: #{tpu_custom_call.1} parent=15 // pred_check
          %p200 = pneg %p77
        $region22: #{tpu_custom_call.1} parent=15 // pred_check_branch
          %202 = sbr.rel (%p200) target = $region24
        $region23: #{tpu_custom_call.1} parent=15 // pred_region
          %p203 = scmp.lt.s32.totalorder %s27, 1
          %s204 = scalar_select %p203, %s27, 1
          %s205 = smul.addr %s204, 8
          %s206 = scalar_lea.vmem %s1, %s205
        $region24: #{tpu_custom_call.1} parent=15 // pred_fallthru
          _
        // Predicated region
        $region25: #{tpu_custom_call.1} parent=15 // pred_check
          %p207 = pneg %p103
        $region26: #{tpu_custom_call.1} parent=15 // pred_check_branch
          %209 = sbr.rel (%p207) target = $region28
        $region27: #{tpu_custom_call.1} parent=15 // pred_region
          %s210 = sand.u32 %s93, 1
          %s211 = scalar_lea.sflag [#allocation7], %s210
          %s212 = sand.u32 %s93, 1
          %s213 = smul.addr %s212, 8
          %s214 = scalar_lea.vmem [#allocation6], %s213
          %216 = vsyncadd %s211, 0
          %s217 = smul.addr %s27, 8
          %s218 = scalar_lea.hbm %s2, %s217
          %s220 = sshll.u32 %s218, 4
          %s221 = int_to_ptr.hbm [resolvable:$true] %s220
          %s222 = sshll.u32 %s214, 4
          %s223 = int_to_ptr.vmem [resolvable:$true] %s222
          %225 = dma.hbm_to_vmem [thread:$0]  %s221, 128, %s223, %s211
        $region28: #{tpu_custom_call.1} parent=15 // pred_fallthru
          _
        // Predicated region
        $region29: #{tpu_custom_call.1} parent=15 // pred_check
          %p226 = pneg %p129
        $region30: #{tpu_custom_call.1} parent=15 // pred_check_branch
          %228 = sbr.rel (%p226) target = $region32
        $region31: #{tpu_custom_call.1} parent=15 // pred_region
          %p229 = scmp.lt.s32.totalorder %s27, 1
          %s230 = scalar_select %p229, %s27, 1
          %s231 = smul.addr %s230, 8
          %s232 = scalar_lea.vmem %s3, %s231
        $region32: #{tpu_custom_call.1} parent=15 // pred_fallthru
          _
      $region16: #{tpu_custom_call.1} parent=5 // pred_fallthru
        _
      %p233 = scmp.le.s32.totalorder 1, %s19
      %p234 = scmp.lt.s32.totalorder %s19, 5
      %p235 = pnand %p233, %p234
      %p236 = pneg %p235
      // Predicated region
      $region33: #{tpu_custom_call.1} parent=5 // pred_check
        _
      $region34: #{tpu_custom_call.1} parent=5 // pred_check_branch
        %238 = sbr.rel (%p235) target = $region36
      $region35: #{tpu_custom_call.1} parent=5 // pred_region
        %s239 = ssub.s32 %s19, 1
        %s240 = sand.u32 %s44, 1
        %s241 = scalar_lea.sflag [#allocation4], %s240
        %s242 = sand.u32 %s44, 1
        %s243 = smul.addr %s242, 16
        %s244 = scalar_lea.vmem [#allocation3], %s243
        // Predicated region
        $region37: #{tpu_custom_call.1} parent=35 // pred_check
          %p245 = pneg %p57
        $region38: #{tpu_custom_call.1} parent=35 // pred_check_branch
          %247 = sbr.rel (%p245) target = $region40
        $region39: #{tpu_custom_call.1} parent=35 // pred_region
          %249 = dma.done %s241, 256
        $region40: #{tpu_custom_call.1} parent=35 // pred_fallthru
          _
        %s250 = sand.u32 %s96, 1
        %s251 = scalar_lea.sflag [#allocation7], %s250
        %s252 = sand.u32 %s96, 1
        %s253 = smul.addr %s252, 8
        %s254 = scalar_lea.vmem [#allocation6], %s253
        // Predicated region
        $region41: #{tpu_custom_call.1} parent=35 // pred_check
          %p255 = pneg %p109
        $region42: #{tpu_custom_call.1} parent=35 // pred_check_branch
          %257 = sbr.rel (%p255) target = $region44
        $region43: #{tpu_custom_call.1} parent=35 // pred_region
          %259 = dma.done %s251, 128
        $region44: #{tpu_custom_call.1} parent=35 // pred_fallthru
          _
        %s260 = sand.u32 %s44, 1
        %s261 = scalar_lea.sflag [#allocation4], %s260
        %s262 = sand.u32 %s44, 1
        %s263 = smul.addr %s262, 16
        %s264 = scalar_lea.vmem [#allocation3], %s263
        %p265 = pneg %p57
        %p266 = pneg %p54
        %p267 = scmp.lt.s32.totalorder %s29, 1
        %s268 = scalar_select %p267, %s29, 1
        %s269 = smul.addr %s268, 8
        %s270 = scalar_lea.vmem %s1, %s269
        %p271 = pneg %p83
        %p272 = pneg %p80
        %s273 = sand.u32 %s96, 1
        %s274 = scalar_lea.sflag [#allocation7], %s273
        %s275 = sand.u32 %s96, 1
        %s276 = smul.addr %s275, 8
        %s277 = scalar_lea.vmem [#allocation6], %s276
        %p278 = pneg %p109
        %p279 = pneg %p106
        %p280 = scmp.lt.s32.totalorder %s29, 1
        %s281 = scalar_select %p280, %s29, 1
        %s282 = smul.addr %s281, 8
        %s283 = scalar_lea.vmem %s3, %s282
        %p284 = pneg %p135
        %p285 = pneg %p132
        %p286 = pneg %p161
        %p287 = pneg %p158
        %s288 = sand.u32 %s148, 1
        %s289 = scalar_lea.sflag [#allocation5], %s288
        %s290 = sand.u32 %s148, 1
        %s291 = smul.addr %s290, 16
        %s292 = scalar_lea.vmem [#allocation8], %s291
        %p293 = scmp.lt.s32.totalorder %s29, 1
        %s294 = scalar_select %p293, %s29, 1
        %s295 = smul.addr %s294, 8
        %s296 = scalar_lea.vmem %s1, %s295
        %p297 = scmp.lt.s32.totalorder %s29, 1
        %s298 = scalar_select %p297, %s29, 1
        %s299 = smul.addr %s298, 8
        %s300 = scalar_lea.vmem %s3, %s299
        %p301 = scmp.eq.s32.totalorder %s29, 0
        // Predicated region
        $region45: #{tpu_custom_call.1} parent=35 // pred_check
          %p302 = pneg %p301
        $region46: #{tpu_custom_call.1} parent=35 // pred_check_branch
          %304 = sbr.rel (%p302) target = $region48
        $region47: #{tpu_custom_call.1} parent=35 // pred_region
          %v305 = vld [vmem:[%s244] sm:$0xff]
          %v306 = vld [vmem:[%s244 + $0x8] sm:$0xff]
          %307 = vst [vmem:[#allocation2] sm:$0xff] %v305
          %308 = vst [vmem:[#allocation2 + $0x8] sm:$0xff] %v306
        $region48: #{tpu_custom_call.1} parent=35 // pred_fallthru
          _
        %v309 = vld [vmem:[#allocation2] sm:$0xff]
        %v310 = vld [vmem:[#allocation2 + $0x8] sm:$0xff]
        %v311 = vld [vmem:[%s296] sm:$0xff]
        %313 = vset.pattern.permute.xlu0 0
        %314 = vperm.xlu0 %313, %v311
        %v315 = vpop.permute.xlu0 %314
        %v317 = vperm.slane %v309, 0
        %v318 = vperm.slane %v310, 0
        %v319 = vmul.f32 %v315, %v317
        %v320 = vmul.f32 %v315, %v318
        %v321 = vadd.f32 %v319, 0.0
        %v322 = vadd.f32 %v320, 0.0
        %323 = vset.pattern.permute.xlu0 1
        %324 = vperm.xlu0 %323, %v311
        %v325 = vpop.permute.xlu0 %324
        %v327 = vperm.slane %v309, 1
        %v328 = vperm.slane %v310, 1
        %v329 = vmul.f32 %v325, %v327
        %v330 = vmul.f32 %v325, %v328
        %v331 = vadd.f32 %v321, %v329
        %v332 = vadd.f32 %v322, %v330
        %333 = vset.pattern.permute.xlu0 2
        %334 = vperm.xlu0 %333, %v311
        %v335 = vpop.permute.xlu0 %334
        %v337 = vperm.slane %v309, 2
        %v338 = vperm.slane %v310, 2
        %v339 = vmul.f32 %v335, %v337
        %v340 = vmul.f32 %v335, %v338
        %v341 = vadd.f32 %v331, %v339
        %v342 = vadd.f32 %v332, %v340
        %343 = vset.pattern.permute.xlu0 3
        %344 = vperm.xlu0 %343, %v311
        %v345 = vpop.permute.xlu0 %344
        %v347 = vperm.slane %v309, 3
        %v348 = vperm.slane %v310, 3
        %v349 = vmul.f32 %v345, %v347
        %v350 = vmul.f32 %v345, %v348
        %v351 = vadd.f32 %v341, %v349
        %v352 = vadd.f32 %v342, %v350
        %353 = vset.pattern.permute.xlu0 4
        %354 = vperm.xlu0 %353, %v311
        %v355 = vpop.permute.xlu0 %354
        %v357 = vperm.slane %v309, 4
        %v358 = vperm.slane %v310, 4
        %v359 = vmul.f32 %v355, %v357
        %v360 = vmul.f32 %v355, %v358
        %v361 = vadd.f32 %v351, %v359
        %v362 = vadd.f32 %v352, %v360
        %363 = vset.pattern.permute.xlu0 5
        %364 = vperm.xlu0 %363, %v311
        %v365 = vpop.permute.xlu0 %364
        %v367 = vperm.slane %v309, 5
        %v368 = vperm.slane %v310, 5
        %v369 = vmul.f32 %v365, %v367
        %v370 = vmul.f32 %v365, %v368
        %v371 = vadd.f32 %v361, %v369
        %v372 = vadd.f32 %v362, %v370
        %373 = vset.pattern.permute.xlu0 6
        %374 = vperm.xlu0 %373, %v311
        %v375 = vpop.permute.xlu0 %374
        %v377 = vperm.slane %v309, 6
        %v378 = vperm.slane %v310, 6
        %v379 = vmul.f32 %v375, %v377
        %v380 = vmul.f32 %v375, %v378
        %v381 = vadd.f32 %v371, %v379
        %v382 = vadd.f32 %v372, %v380
        %383 = vset.pattern.permute.xlu0 7
        %384 = vperm.xlu0 %383, %v311
        %v385 = vpop.permute.xlu0 %384
        %v387 = vperm.slane %v309, 7
        %v388 = vperm.slane %v310, 7
        %v389 = vmul.f32 %v385, %v387
        %v390 = vmul.f32 %v385, %v388
        %v391 = vadd.f32 %v381, %v389
        %v392 = vadd.f32 %v382, %v390
        %v393 = vlaneseq
        %v394 = vand.u32 %v393, 127
        %v395 = vadd.s32 %v394, 128
        %vm396 = vcmp.lt.s32.totalorder %v394, 0
        %v397 = vsub.s32 0, %v394
        %v398 = vsel %vm396, %v397, %v394
        %v399 = vshrl.u32 %v398, 4
        %v400 = vand.u32 %v398, 15
        %v401 = vsub.s32 0, %v400
        %v402 = vsel %vm396, %v401, %v400
        %vm403 = vcmp.lt.s32.totalorder %v395, 0
        %v404 = vsub.s32 0, %v395
        %v405 = vsel %vm403, %v404, %v395
        %v406 = vshrl.u32 %v405, 4
        %v407 = vand.u32 %v405, 15
        %v408 = vsub.s32 0, %v407
        %v409 = vsel %vm403, %v408, %v407
        %vm410 = vcmp.ne.s32.totalorder %v402, 0
        %vm411 = vcmp.ne.s32.totalorder %v409, 0
        %vm412 = vcmp.lt.s32.totalorder %v402, 0
        %vm413 = vcmp.lt.s32.totalorder %v409, 0
        %vm414 = vmand %vm412, %vm410
        %vm415 = vmand %vm413, %vm411
        %v416 = vadd.s32 %v402, 16
        %v417 = vadd.s32 %v409, 16
        %v418 = vsel %vm414, %v416, %v402
        %v419 = vsel %vm415, %v417, %v409
        %v420 = vld [vmem:[%s254] sm:$0xff]
        %421 = vrot.lane.b32.xlu0 %v391, 17
        %v422 = vpop.permute.xlu0 %421
        %423 = vrot.lane.b32.xlu0 %v392, 17
        %v424 = vpop.permute.xlu0 %423
        %vm425 = vcmp.lt.s32.totalorder %v394, 17
        %v426 = vsel %vm425, %v422, %v424
        %v427 = vsel %vm425, %v424, %v422
        %vm428 = vcmp.ge.s32.totalorder %v394, 16
        %vm429 = vcmp.ge.s32.totalorder %v395, 16
        %vm430 = vcmp.ge.s32.totalorder %v418, 1
        %vm431 = vcmp.ge.s32.totalorder %v419, 1
        %vm432 = vmand %vm428, %vm430
        %vm433 = vmand %vm429, %vm431
        %v434 = vsel %vm432, %v427, 0.0
        %v435 = vsel %vm433, %v426, 0.0
        %437 = vset.pattern.permute.xlu0 0
        %438 = vperm.xlu0 %437, %v420
        %v439 = vpop.permute.xlu0 %438
        %v441 = vmul.f32 %v439, %v434
        %v442 = vmul.f32 %v439, %v435
        %v443 = vadd.f32 %v441, 0.0
        %v444 = vadd.f32 %v442, 0.0
        %445 = vrot.lane.b32.xlu0 %v391, 16
        %v446 = vpop.permute.xlu0 %445
        %447 = vrot.lane.b32.xlu0 %v392, 16
        %v448 = vpop.permute.xlu0 %447
        %vm449 = vcmp.lt.s32.totalorder %v394, 16
        %v450 = vsel %vm449, %v446, %v448
        %v451 = vsel %vm449, %v448, %v446
        %v452 = vsel %vm428, %v451, 0.0
        %v453 = vsel %vm429, %v450, 0.0
        %454 = vset.pattern.permute.xlu0 1
        %455 = vperm.xlu0 %454, %v420
        %v456 = vpop.permute.xlu0 %455
        %v458 = vmul.f32 %v456, %v452
        %v459 = vmul.f32 %v456, %v453
        %v460 = vadd.f32 %v443, %v458
        %v461 = vadd.f32 %v444, %v459
        %462 = vrot.lane.b32.xlu0 %v391, 15
        %v463 = vpop.permute.xlu0 %462
        %464 = vrot.lane.b32.xlu0 %v392, 15
        %v465 = vpop.permute.xlu0 %464
        %vm466 = vcmp.lt.s32.totalorder %v394, 15
        %v467 = vsel %vm466, %v463, %v465
        %v468 = vsel %vm466, %v465, %v463
        %vm469 = vcmp.lt.s32.totalorder %v418, 15
        %vm470 = vcmp.lt.s32.totalorder %v419, 15
        %vm471 = vmand %vm428, %vm469
        %vm472 = vmand %vm429, %vm470
        %v473 = vsel %vm471, %v468, 0.0
        %v474 = vsel %vm472, %v467, 0.0
        %475 = vset.pattern.permute.xlu0 2
        %476 = vperm.xlu0 %475, %v420
        %v477 = vpop.permute.xlu0 %476
        %v479 = vmul.f32 %v477, %v473
        %v480 = vmul.f32 %v477, %v474
        %v481 = vadd.f32 %v460, %v479
        %v482 = vadd.f32 %v461, %v480
        %483 = vrot.lane.b32.xlu0 %v391, 1
        %v484 = vpop.permute.xlu0 %483
        %485 = vrot.lane.b32.xlu0 %v392, 1
        %v486 = vpop.permute.xlu0 %485
        %vm487 = vcmp.lt.s32.totalorder %v394, 1
        %v488 = vsel %vm487, %v484, %v486
        %v489 = vsel %vm487, %v486, %v484
        %v490 = vsel %vm430, %v489, 0.0
        %v491 = vsel %vm431, %v488, 0.0
        %492 = vset.pattern.permute.xlu0 3
        %493 = vperm.xlu0 %492, %v420
        %v494 = vpop.permute.xlu0 %493
        %v496 = vmul.f32 %v494, %v490
        %v497 = vmul.f32 %v494, %v491
        %v498 = vadd.f32 %v481, %v496
        %v499 = vadd.f32 %v482, %v497
        %500 = vset.pattern.permute.xlu0 4
        %501 = vperm.xlu0 %500, %v420
        %v502 = vpop.permute.xlu0 %501
        %v504 = vmul.f32 %v502, %v391
        %v505 = vmul.f32 %v502, %v392
        %v506 = vadd.f32 %v498, %v504
        %v507 = vadd.f32 %v499, %v505
        %508 = vrot.lane.b32.xlu0 %v391, 127
        %v509 = vpop.permute.xlu0 %508
        %510 = vrot.lane.b32.xlu0 %v392, 127
        %v511 = vpop.permute.xlu0 %510
        %vm512 = vcmp.lt.s32.totalorder %v394, 127
        %v513 = vsel %vm512, %v509, %v511
        %v514 = vsel %vm512, %v511, %v509
        %v515 = vsel %vm469, %v513, 0.0
        %v516 = vsel %vm470, %v514, 0.0
        %517 = vset.pattern.permute.xlu0 5
        %518 = vperm.xlu0 %517, %v420
        %v519 = vpop.permute.xlu0 %518
        %v521 = vmul.f32 %v519, %v515
        %v522 = vmul.f32 %v519, %v516
        %v523 = vadd.f32 %v506, %v521
        %v524 = vadd.f32 %v507, %v522
        %525 = vrot.lane.b32.xlu0 %v391, 113
        %v526 = vpop.permute.xlu0 %525
        %527 = vrot.lane.b32.xlu0 %v392, 113
        %v528 = vpop.permute.xlu0 %527
        %vm529 = vcmp.lt.s32.totalorder %v394, 113
        %v530 = vsel %vm529, %v526, %v528
        %v531 = vsel %vm529, %v528, %v526
        %vm532 = vcmp.lt.s32.totalorder %v394, 240
        %vm533 = vcmp.lt.s32.totalorder %v395, 240
        %vm534 = vmand %vm532, %vm430
        %vm535 = vmand %vm533, %vm431
        %v536 = vsel %vm534, %v530, 0.0
        %v537 = vsel %vm535, %v531, 0.0
        %538 = vset.pattern.permute.xlu0 6
        %539 = vperm.xlu0 %538, %v420
        %v540 = vpop.permute.xlu0 %539
        %v542 = vmul.f32 %v540, %v536
        %v543 = vmul.f32 %v540, %v537
        %v544 = vadd.f32 %v523, %v542
        %v545 = vadd.f32 %v524, %v543
        %546 = vrot.lane.b32.xlu0 %v391, 112
        %v547 = vpop.permute.xlu0 %546
        %548 = vrot.lane.b32.xlu0 %v392, 112
        %v549 = vpop.permute.xlu0 %548
        %vm550 = vcmp.lt.s32.totalorder %v394, 112
        %v551 = vsel %vm550, %v547, %v549
        %v552 = vsel %vm550, %v549, %v547
        %v553 = vsel %vm532, %v551, 0.0
        %v554 = vsel %vm533, %v552, 0.0
        %555 = vset.pattern.permute.xlu0 7
        %556 = vperm.xlu0 %555, %v420
        %v557 = vpop.permute.xlu0 %556
        %v559 = vmul.f32 %v557, %v553
        %v560 = vmul.f32 %v557, %v554
        %v561 = vadd.f32 %v544, %v559
        %v562 = vadd.f32 %v545, %v560
        %563 = vrot.lane.b32.xlu0 %v391, 111
        %v564 = vpop.permute.xlu0 %563
        %565 = vrot.lane.b32.xlu0 %v392, 111
        %v566 = vpop.permute.xlu0 %565
        %vm567 = vcmp.lt.s32.totalorder %v394, 111
        %v568 = vsel %vm567, %v564, %v566
        %v569 = vsel %vm567, %v566, %v564
        %vm570 = vmand %vm532, %vm469
        %vm571 = vmand %vm533, %vm470
        %v572 = vsel %vm570, %v568, 0.0
        %v573 = vsel %vm571, %v569, 0.0
        %574 = vset.pattern.permute.xlu0 8
        %575 = vperm.xlu0 %574, %v420
        %v576 = vpop.permute.xlu0 %575
        %v578 = vmul.f32 %v576, %v572
        %v579 = vmul.f32 %v576, %v573
        %v580 = vadd.f32 %v561, %v578
        %v581 = vadd.f32 %v562, %v579
        %v582 = vld [vmem:[%s300] sm:$0xff]
        %584 = vset.pattern.permute.xlu0 0
        %585 = vperm.xlu0 %584, %v582
        %v586 = vpop.permute.xlu0 %585
        %v588 = vadd.f32 %v580, %v586
        %v589 = vadd.f32 %v581, %v586
        %v590 = vmax.f32 %v588, 0.0
        %v591 = vmax.f32 %v589, 0.0
        %592 = vst [vmem:[#allocation2] sm:$0xff] %v590
        %593 = vst [vmem:[#allocation2 + $0x8] sm:$0xff] %v591
        %p594 = scmp.eq.s32.totalorder %s29, 1
        // Predicated region
        $region49: #{tpu_custom_call.1} parent=35 // pred_check
          %p595 = pneg %p594
        $region50: #{tpu_custom_call.1} parent=35 // pred_check_branch
          %597 = sbr.rel (%p595) target = $region52
        $region51: #{tpu_custom_call.1} parent=35 // pred_region
          %598 = vst [vmem:[%s292] sm:$0xff] %v590
          %599 = vst [vmem:[%s292 + $0x8] sm:$0xff] %v591
        $region52: #{tpu_custom_call.1} parent=35 // pred_fallthru
          _
        %s600 = sand.u32 %s148, 1
        %s601 = scalar_lea.sflag [#allocation5], %s600
        %s602 = sand.u32 %s148, 1
        %s603 = smul.addr %s602, 16
        %s604 = scalar_lea.vmem [#allocation8], %s603
        // Predicated region
        $region53: #{tpu_custom_call.1} parent=35 // pred_check
          %p605 = pneg %p158
        $region54: #{tpu_custom_call.1} parent=35 // pred_check_branch
          %607 = sbr.rel (%p605) target = $region56
        $region55: #{tpu_custom_call.1} parent=35 // pred_region
          %609 = vsyncadd %s601, 0
          %s610 = smul.addr %s28, 2
          %s611 = smul.addr %s610, 8
          %s612 = scalar_lea.hbm %s4, %s611
          %s614 = sshll.u32 %s604, 4
          %s615 = int_to_ptr.vmem [resolvable:$true] %s614
          %s616 = sshll.u32 %s612, 4
          %s617 = int_to_ptr.hbm [resolvable:$true] %s616
          %619 = dma.vmem_to_hbm [thread:$0]  %s615, 256, %s617, %s601
        $region56: #{tpu_custom_call.1} parent=35 // pred_fallthru
          _
      $region36: #{tpu_custom_call.1} parent=5 // pred_fallthru
        _
      %p620 = scmp.le.s32.totalorder 2, %s19
      // Predicated region
      $region57: #{tpu_custom_call.1} parent=5 // pred_check
        %p621 = pneg %p620
      $region58: #{tpu_custom_call.1} parent=5 // pred_check_branch
        %623 = sbr.rel (%p621) target = $region60
      $region59: #{tpu_custom_call.1} parent=5 // pred_region
        %s624 = ssub.s32 %s19, 2
        // Predicated region
        $region61: #{tpu_custom_call.1} parent=59 // pred_check
          %p625 = pneg %p164
        $region62: #{tpu_custom_call.1} parent=59 // pred_check_branch
          %627 = sbr.rel (%p625) target = $region64
        $region63: #{tpu_custom_call.1} parent=59 // pred_region
          %s628 = sand.u32 %s149, 1
          %s629 = scalar_lea.sflag [#allocation5], %s628
          %s630 = sand.u32 %s149, 1
          %s631 = smul.addr %s630, 16
          %s632 = scalar_lea.vmem [#allocation8], %s631
          %634 = dma.done %s629, 256
        $region64: #{tpu_custom_call.1} parent=59 // pred_fallthru
          _
      $region60: #{tpu_custom_call.1} parent=5 // pred_fallthru
        _
    $region6: #{tpu_custom_call.1} parent=1 // loop_footer
      %s23 = sadd.s32 1, %s19
    $region7: #{tpu_custom_call.1} parent=1 // loop_footer_branch
      %18 = sbr.rel target = $region3
    $region8: #{tpu_custom_call.1} parent=1 // loop_exit
      _
    %635 = vsyncpa [#allocation4], 1
    %s636 = scalar_lea.sflag [#allocation4], 1
    %637 = vsyncpa %s636, 1
    %638 = vsyncpa [#allocation7], 1
    %s639 = scalar_lea.sflag [#allocation7], 1
    %640 = vsyncpa %s639, 1
    %641 = vsyncpa [#allocation5], 1
    %s642 = scalar_lea.sflag [#allocation5], 1
    %643 = vsyncpa %s642, 1

</llo_original>
